<compile_context>
chip_gen: v7x
topology: tpu7x:2x2x1
jax: 0.10.0
libtpu: 0.0.40
codegen_flags: <defaults>
</compile_context>

<pallas_src>
import jax
import jax.numpy as jnp
from jax.experimental import pallas as pl
from jax.experimental.pallas import tpu as pltpu

_LANE = 128      # lane width (last dim of a VMEM tile pads to this)
_SUBLANE = 8     # f32 sublane count (second-last dim pads to this)


def _round_up(x, m):
    return ((x + m - 1) // m) * m


# --------------------------------------------------------------------------- kernels
def _linear_kernel(x_ref, w_ref, b_ref, o_ref):
    # MXU matmul with f32 accumulation + bias broadcast-add on the VPU.
    acc = jnp.dot(x_ref[...], w_ref[...], preferred_element_type=jnp.float32)
    o_ref[...] = (acc + b_ref[...]).astype(o_ref.dtype)


def _linear_kernel_kn(x_ref, w_ref, b_ref, o_ref, acc_ref):
    # K-tiled variant: accumulate partial products, add bias + write back on last k.
    k = pl.program_id(2)

    @pl.when(k == 0)
    def _():
        acc_ref[...] = jnp.zeros_like(acc_ref)

    acc_ref[...] += jnp.dot(x_ref[...], w_ref[...],
                            preferred_element_type=jnp.float32)

    @pl.when(k == pl.num_programs(2) - 1)
    def _():
        o_ref[...] = (acc_ref[...] + b_ref[...]).astype(o_ref.dtype)


# --------------------------------------------------------------------------- params
def prepare_params(weight, bias):
    """One-time parameter prep, hoisted out of the per-call hot path.

    weight: (C, F) PyTorch nn.Linear layout -> (F, C)
    bias:   (C,)                            -> (1, C)
    """
    return weight.T, bias.reshape(1, -1)


# --------------------------------------------------------------------------- sizing
def _resident_footprint_bytes(TB, F, C):
    """Padded, double-buffered VMEM footprint of the resident-W^T path."""
    f_lane = _round_up(F, _LANE)           # F is the lane dim of the x tile
    c_lane = _round_up(C, _LANE)           # C is the lane dim of W^T / bias / out
    f_sub = _round_up(F, _SUBLANE)         # F is the sublane dim of W^T
    tb_sub = _round_up(max(TB, 1), _SUBLANE)
    x_bytes = 2 * tb_sub * f_lane * 4      # double-buffered streamed x tile
    o_bytes = 2 * tb_sub * c_lane * 4      # double-buffered out tile
    w_bytes = 2 * f_sub * c_lane * 4       # constant index_map still gets 2 buffers
    b_bytes = 2 * _SUBLANE * c_lane * 4
    return x_bytes + o_bytes + w_bytes + b_bytes


def _tiled_footprint_bytes(TB, TN, TK, F, C):
    tb = _round_up(TB, _SUBLANE)
    tk_lane = _round_up(min(TK, F), _LANE)
    tk_sub = _round_up(min(TK, F), _SUBLANE)
    tn_lane = _round_up(min(TN, C), _LANE)
    x_bytes = 2 * tb * tk_lane * 4
    w_bytes = 2 * tk_sub * tn_lane * 4
    b_bytes = 2 * _SUBLANE * tn_lane * 4
    o_bytes = 2 * tb * tn_lane * 4
    acc_bytes = tb * tn_lane * 4           # single VMEM scratch accumulator
    return x_bytes + w_bytes + b_bytes + o_bytes + acc_bytes


def _vmem_limit_from(footprint_bytes):
    # footprint + 25% headroom + 2 MiB slack; floored/capped to stay legal on every
    # generation (v7x per-TC physical VMEM is 64 MiB).
    lim = footprint_bytes * 5 // 4 + (2 << 20)
    return int(min(max(lim, 16 << 20), 56 << 20))


def _pick_batch_tile(B, F, C, vmem_budget_bytes=24 << 20):
    """Pick a batch tile TB (multiple of 8) for the resident-W^T path, with padded
    and double-buffered accounting.  Returns None if W^T can't stay resident with a
    worthwhile TB (caller then uses the K/N-tiled path)."""
    f_lane = _round_up(F, _LANE)
    c_lane = _round_up(C, _LANE)
    const_bytes = 2 * (_round_up(F, _SUBLANE) + _SUBLANE) * c_lane * 4  # W^T + bias
    per_row = 2 * 4 * (f_lane + c_lane)     # double-buffered x row + out row
    avail = vmem_budget_bytes - const_bytes

    # Need at least min(B, 256) rows per step for the resident path to be worth it;
    # otherwise stream W^T panels via the tiled path instead.
    needed_rows = _round_up(min(B, 256), _SUBLANE)
    if avail < per_row * needed_rows:
        return None

    tb = min(avail // per_row, 1024)        # >1K rows/step: negligible extra gain
    tb = max((tb // _SUBLANE) * _SUBLANE, _SUBLANE)
    if B <= tb:
        return B                            # single full block (legal block shape)

    # Steer toward an even number of grid steps so the "parallel" batch axis splits
    # evenly across v7x's two TensorCores.
    n = pl.cdiv(B, tb)
    if n % 2 == 1:
        n += 1
        tb = max(_round_up(pl.cdiv(B, n), _SUBLANE), _SUBLANE)
    return tb


def _pick_kn_tiles(B, F, C):
    TN = C if C <= 256 else 256             # 256 matches the 2x256 MXU on v6e/v7x
    TK = F if F <= 512 else 512             # multiple of 128 (or full F)
    TB = B if B <= 512 else 512
    if B > TB:                              # even grid-step count for v7x megacore
        n = pl.cdiv(B, TB)
        if n % 2 == 1:
            n += 1
            TB = max(_round_up(pl.cdiv(B, n), _SUBLANE), _SUBLANE)
    return TB, TN, TK


# --------------------------------------------------------------------------- wrappers
def _linear_resident(x, w_t, b2d, TB):
    B, F = x.shape
    C = w_t.shape[1]
    vmem_limit = _vmem_limit_from(_resident_footprint_bytes(TB, F, C))
    return pl.pallas_call(
        _linear_kernel,
        out_shape=jax.ShapeDtypeStruct((B, C), x.dtype),
        grid_spec=pl.GridSpec(
            grid=(pl.cdiv(B, TB),),
            in_specs=[
                pl.BlockSpec((TB, F), lambda i: (i, 0)),   # streamed batch tile
                pl.BlockSpec((F, C), lambda i: (0, 0)),    # resident W^T
                pl.BlockSpec((1, C), lambda i: (0, 0)),    # resident bias row
            ],
            out_specs=pl.BlockSpec((TB, C), lambda i: (i, 0)),
        ),
        compiler_params=pltpu.CompilerParams(
            dimension_semantics=("parallel",),             # no reduction axis
            vmem_limit_bytes=vmem_limit,
        ),
        cost_estimate=pl.CostEstimate(
            flops=2 * B * F * C,
            transcendentals=0,
            bytes_accessed=4 * (B * F + F * C + B * C),
        ),
    )(x, w_t, b2d)


def _linear_tiled(x, w_t, b2d, TB, TN, TK):
    B, F = x.shape
    C = w_t.shape[1]
    vmem_limit = _vmem_limit_from(_tiled_footprint_bytes(TB, TN, TK, F, C))
    grid = (pl.cdiv(B, TB), pl.cdiv(C, TN), pl.cdiv(F, TK))
    return pl.pallas_call(
        _linear_kernel_kn,
        out_shape=jax.ShapeDtypeStruct((B, C), x.dtype),
        grid_spec=pltpu.PrefetchScalarGridSpec(
            num_scalar_prefetch=0,
            grid=grid,
            in_specs=[
                pl.BlockSpec((TB, TK), lambda i, j, k: (i, k)),  # x panel
                pl.BlockSpec((TK, TN), lambda i, j, k: (k, j)),  # W^T panel
                pl.BlockSpec((1, TN), lambda i, j, k: (0, j)),   # bias slice
            ],
            out_specs=pl.BlockSpec((TB, TN), lambda i, j, k: (i, j)),
            scratch_shapes=[pltpu.VMEM((TB, TN), jnp.float32)],
        ),
        compiler_params=pltpu.CompilerParams(
            dimension_semantics=("parallel", "parallel", "arbitrary"),
            vmem_limit_bytes=vmem_limit,
        ),
        cost_estimate=pl.CostEstimate(
            flops=2 * B * F * C,
            transcendentals=0,
            bytes_accessed=4 * (B * F + F * C + B * C),
        ),
    )(x, w_t, b2d)


def linear_pallas(x, w_t, b2d):
    """x: (B, F); w_t: (F, C) pre-transposed weight; b2d: (1, C) -> (B, C)."""
    B, F = x.shape
    C = w_t.shape[1]
    TB = _pick_batch_tile(B, F, C)
    if TB is not None:
        return _linear_resident(x, w_t, b2d, TB)
    TB, TN, TK = _pick_kn_tiles(B, F, C)
    return _linear_tiled(x, w_t, b2d, TB, TN, TK)


def logistic_regression_forward(x, w_t, b2d, min_pallas_elems=1 << 14):
    """Forward of LogisticRegression (== nn.Linear on pre-transposed params).
    Small problems skip Pallas: kernel launch/DMA overhead dwarfs ~KFLOP matmuls."""
    if x.shape[0] * x.shape[1] < min_pallas_elems:
        return x @ w_t + b2d
    return linear_pallas(x, w_t, b2d)


# --------------------------------------------------------------------------- test
if __name__ == "__main__":
    # Small shapes implied by the module: n_features=32, n_classes=8, batch=8.
    B, n_features, n_classes = 8, 32, 8

    key = jax.random.PRNGKey(0)
    kx, kw, kb = jax.random.split(key, 3)

    x = jax.random.normal(kx, (B, n_features), dtype=jnp.float32)
    # Deterministic init mimicking nn.Linear's uniform(-1/sqrt(F), 1/sqrt(F)).
    bound = 1.0 / jnp.sqrt(jnp.float32(n_features))
    weight = jax.random.uniform(
        kw, (n_classes, n_features), dtype=jnp.float32, minval=-bound, maxval=bound
    )
    bias = jax.random.uniform(
        kb, (n_classes,), dtype=jnp.float32, minval=-bound, maxval=bound
    )

    # Parameter prep happens once, outside the hot path.
    w_t, b2d = prepare_params(weight, bias)

    # Reference (same math as torch.nn.Linear).
    ref = x @ weight.T + bias

    # 1) Force the Pallas resident-W^T path (dispatcher would route this tiny problem
    #    to plain XLA).
    out = jax.block_until_ready(linear_pallas(x, w_t, b2d))
    assert out.shape == (B, n_classes)
    assert jnp.allclose(out, ref, atol=1e-5, rtol=1e-5)

    # 2) Exercise the K/N-tiled fallback path too (degenerate tiles at toy shapes).
    out_t = jax.block_until_ready(
        _linear_tiled(x, w_t, b2d, TB=8, TN=n_classes, TK=n_features)
    )
    assert jnp.allclose(out_t, ref, atol=1e-5, rtol=1e-5)

    # 3) Sanity-check the size-gated dispatcher gives identical results.
    out2 = jax.block_until_ready(logistic_regression_forward(x, w_t, b2d))
    assert jnp.allclose(out2, ref, atol=1e-5, rtol=1e-5)

    print("KERNEL_OK")
</pallas_src>

<mosaic_0001>
module attributes {stable_mosaic.version = 11 : i64} {
  func.func @_linear_kernel(%arg0: i32, %arg1: memref<8x32xf32, #tpu.memory_space<vmem>>, %arg2: memref<32x8xf32, #tpu.memory_space<vmem>>, %arg3: memref<1x8xf32, #tpu.memory_space<vmem>>, %arg4: memref<8x8xf32, #tpu.memory_space<vmem>>) attributes {dimension_semantics = [#tpu.dimension_semantics<parallel>], iteration_bounds = array<i64: 1>, scalar_prefetch = 0 : i64, scratch_operands = 0 : i64, tpu.core_type = #tpu.core_type<tc>, window_params = [{transform_indices = @transform_0, window_bounds = array<i64: 8, 32>}, {pipeline_mode = #tpu.pipeline_mode<synchronous>, transform_indices = @transform_1, window_bounds = array<i64: 32, 8>}, {pipeline_mode = #tpu.pipeline_mode<synchronous>, transform_indices = @transform_2, window_bounds = array<i64: 1, 8>}, {transform_indices = @transform_3, window_bounds = array<i64: 8, 8>}]} {
    %c0 = arith.constant 0 : index
    %c0_0 = arith.constant 0 : index
    %0 = vector.load %arg1[%c0, %c0_0] : memref<8x32xf32, #tpu.memory_space<vmem>>, vector<8x32xf32>
    %c0_1 = arith.constant 0 : index
    %c0_2 = arith.constant 0 : index
    %1 = vector.load %arg2[%c0_1, %c0_2] : memref<32x8xf32, #tpu.memory_space<vmem>>, vector<32x8xf32>
    %cst = arith.constant dense<0.000000e+00> : vector<8x8xf32>
    %2 = tpu.matmul %0, %1, %cst {dimension_numbers = #tpu.dot_dimension_numbers<[1], [0], [0], [1], [0, 0, 1, 1], [], []>} : vector<8x32xf32>, vector<32x8xf32>, vector<8x8xf32> -> vector<8x8xf32>
    %c0_3 = arith.constant 0 : index
    %c0_4 = arith.constant 0 : index
    %3 = vector.load %arg3[%c0_3, %c0_4] : memref<1x8xf32, #tpu.memory_space<vmem>>, vector<1x8xf32>
    %4 = vector.broadcast %3 : vector<1x8xf32> to vector<8x8xf32>
    %5 = arith.addf %2, %4 : vector<8x8xf32>
    %c0_5 = arith.constant 0 : index
    %c0_6 = arith.constant 0 : index
    %6 = vector.load %arg4[%c0_5, %c0_6] : memref<8x8xf32, #tpu.memory_space<vmem>>, vector<8x8xf32>
    tpu.vector_store %arg4[%c0_5, %c0_6], %5 {strides = array<i32>} : memref<8x8xf32, #tpu.memory_space<vmem>>, vector<8x8xf32>,
    return
  }
  func.func @transform_0(%arg0: i32) -> (i32, i32) {
    %c0_i32 = arith.constant 0 : i32
    %c0_i32_0 = arith.constant 0 : i32
    return %arg0, %c0_i32 : i32, i32
  }
  func.func @transform_1(%arg0: i32) -> (i32, i32) {
    %c0_i32 = arith.constant 0 : i32
    %c0_i32_0 = arith.constant 0 : i32
    %c0_i32_1 = arith.constant 0 : i32
    return %c0_i32, %c0_i32_0 : i32, i32
  }
  func.func @transform_2(%arg0: i32) -> (i32, i32) {
    %c0_i32 = arith.constant 0 : i32
    %c0_i32_0 = arith.constant 0 : i32
    %c0_i32_1 = arith.constant 0 : i32
    return %c0_i32, %c0_i32_0 : i32, i32
  }
  func.func @transform_3(%arg0: i32) -> (i32, i32) {
    %c0_i32 = arith.constant 0 : i32
    %c0_i32_0 = arith.constant 0 : i32
    return %arg0, %c0_i32 : i32, i32
  }
}

</mosaic_0001>

<llo_original>
// kernel: tpu_custom_call.1
$region0: #{tpu_custom_call.1}
  #allocation0 [shape = 'u32[]', space=smem, size = 0x4, offset = 0x4, fixed_abs, tag = 'smem constant byte address 0x4 - core index']
  #allocation1 [shape = 'u32[144,128]{1,0:T(1,128)}', space=vmem, size = 0x12000, scoped, tag = 'internal scratch']
  %s0 = inlined_call_operand.vmem [shape: f32[8,32], index: 0, kind: input, shape index: {}]
  %s1 = inlined_call_operand.vmem [shape: f32[32,8], index: 1, kind: input, shape index: {}]
  %s2 = inlined_call_operand.vmem [shape: f32[1,8], index: 2, kind: input, shape index: {}]
  %s3 = inlined_call_operand.hbm [shape: f32[8,8], index: 3, kind: output, shape index: {}]
  %s4 = sld [smem:[#allocation0]]
  $region22: #{tpu_custom_call.1} parent=0
    _
  %s6 = ssub.s32 1, %s4
  %s7 = scalar_select 0, %s6, %s4
  $region1: #{tpu_custom_call.1} parent=0
    #allocation2 [shape = 'u8[4096]{0}', space=vmem, size = 0x1000, scoped, tag = 'output window, operand 0, single buffered']
    #allocation3 [shape = 's32[1]{0}', space=sflag, size = 0x4, scoped, tag = 'scoped memory for tpu_custom_call.1']
    %8 = vsyncpa [#allocation3], 0
    // Predicated region
    $region2: #{tpu_custom_call.1} parent=1 // pred_check
      _
    $region3: #{tpu_custom_call.1} parent=1 // pred_check_branch
      %10 = sbr.rel (0) target = $region5
    $region4: #{tpu_custom_call.1} parent=1 // pred_region
      _
    $region5: #{tpu_custom_call.1} parent=1 // pred_fallthru
      _
    // Predicated region
    $region6: #{tpu_custom_call.1} parent=1 // pred_check
      _
    $region7: #{tpu_custom_call.1} parent=1 // pred_check_branch
      %12 = sbr.rel (0) target = $region9
    $region8: #{tpu_custom_call.1} parent=1 // pred_region
      _
    $region9: #{tpu_custom_call.1} parent=1 // pred_fallthru
      _
    // Predicated region
    $region10: #{tpu_custom_call.1} parent=1 // pred_check
      _
    $region11: #{tpu_custom_call.1} parent=1 // pred_check_branch
      %14 = sbr.rel (0) target = $region13
    $region12: #{tpu_custom_call.1} parent=1 // pred_region
      _
    $region13: #{tpu_custom_call.1} parent=1 // pred_fallthru
      _
    %v15 = vld [vmem:[%s0] sm:$0xff]
    %v16 = vld [vmem:[%s1] sm:$0xff]
    %v17 = vld [vmem:[%s1 + $0x8] sm:$0xff]
    %v18 = vld [vmem:[%s1 + $0x10] sm:$0xff]
    %v19 = vld [vmem:[%s1 + $0x18] sm:$0xff]
    %v20 = vld [vmem:[%s2] sm:$0x1]
    %v22 = vlaneseq
    %v23 = vshrl.u32 %v22, 7
    %v24 = vsub.s32 0, %v23
    %v25 = vrot.slane %v20, %v24
    %vm27 = vcmask 261120
    %v29 = vsel %vm27, %v15, 0
    %31 = vmatprep.subr.mxu0 0.0
    %32 = vmatpush1.msra.mxu0 %v16
    %33 = vmatprep.subr.mxu0 0.0
    %34 = vmatpush1.msra.mxu0 %v17
    %35 = vmatprep.subr.mxu0 0.0
    %36 = vmatpush1.msra.mxu0 %v18
    %37 = vmatprep.subr.mxu0 0.0
    %38 = vmatpush1.msra.mxu0 %v19
    %39 = vmatprep.subr.mxu0 0.0
    %40 = vmatpush1.msra.mxu0 0.0
    %41 = vmatprep.subr.mxu0 0.0
    %42 = vmatpush1.msra.mxu0 0.0
    %43 = vmatprep.subr.mxu0 0.0
    %44 = vmatpush1.msra.mxu0 0.0
    %45 = vmatprep.subr.mxu0 0.0
    %46 = vmatpush1.msra.mxu0 0.0
    %47 = vmatprep.subr.mxu0 0.0
    %48 = vmatpush1.msra.mxu0 0.0
    %49 = vmatprep.subr.mxu0 0.0
    %50 = vmatpush1.msra.mxu0 0.0
    %51 = vmatprep.subr.mxu0 0.0
    %52 = vmatpush1.msra.mxu0 0.0
    %53 = vmatprep.subr.mxu0 0.0
    %54 = vmatpush1.msra.mxu0 0.0
    %55 = vmatprep.subr.mxu0 0.0
    %56 = vmatpush1.msra.mxu0 0.0
    %57 = vmatprep.subr.mxu0 0.0
    %58 = vmatpush1.msra.mxu0 0.0
    %59 = vmatprep.subr.mxu0 0.0
    %60 = vmatpush1.msra.mxu0 0.0
    %61 = vmatprep.subr.mxu0 0.0
    %62 = vmatpush1.msra.mxu0 0.0
    %63 = vmatprep.subr.mxu0 0.0
    %64 = vmatpush1.msra.mxu0 0.0
    %65 = vmatprep.subr.mxu0 0.0
    %66 = vmatpush1.msra.mxu0 0.0
    %67 = vmatprep.subr.mxu0 0.0
    %68 = vmatpush1.msra.mxu0 0.0
    %69 = vmatprep.subr.mxu0 0.0
    %70 = vmatpush1.msra.mxu0 0.0
    %71 = vmatprep.subr.mxu0 0.0
    %72 = vmatpush1.msra.mxu0 0.0
    %73 = vmatprep.subr.mxu0 0.0
    %74 = vmatpush1.msra.mxu0 0.0
    %75 = vmatprep.subr.mxu0 0.0
    %76 = vmatpush1.msra.mxu0 0.0
    %77 = vmatprep.subr.mxu0 0.0
    %78 = vmatpush1.msra.mxu0 0.0
    %79 = vmatprep.subr.mxu0 0.0
    %80 = vmatpush1.msra.mxu0 0.0
    %81 = vmatprep.subr.mxu0 0.0
    %82 = vmatpush1.msra.mxu0 0.0
    %83 = vmatprep.subr.mxu0 0.0
    %84 = vmatpush1.msra.mxu0 0.0
    %85 = vmatprep.subr.mxu0 0.0
    %86 = vmatpush1.msra.mxu0 0.0
    %87 = vmatprep.subr.mxu0 0.0
    %88 = vmatpush1.msra.mxu0 0.0
    %89 = vmatprep.subr.mxu0 0.0
    %90 = vmatpush1.msra.mxu0 0.0
    %91 = vmatprep.subr.mxu0 0.0
    %92 = vmatpush1.msra.mxu0 0.0
    %93 = vmatprep.subr.mxu0 0.0
    %94 = vmatpush1.msra.mxu0 0.0
    %95 = vmatprep.mubr.f32.mxu0 0.0
    %96 = vmatmul.mubr.f32.gmra.mrb[0].mxu0 %v29
    %v97 = vpop.f32.mrb[0].mxu0
    %v98 = vadd.f32 %v25, %v97
    %v99 = vpop.f32.mrb[0].mxu0
    %100 = vdwg.mxu0
    %vm101 = vcmask 64512
    %102 = vst.msk [vmem:[#allocation2] sm:$0xff] %vm101, %v98
    // Predicated region
    $region14: #{tpu_custom_call.1} parent=1 // pred_check
      _
    $region15: #{tpu_custom_call.1} parent=1 // pred_check_branch
      %104 = sbr.rel (0) target = $region17
    $region16: #{tpu_custom_call.1} parent=1 // pred_region
      %s106 = ssub.s32 128, 128
      %107 = vsyncadd [#allocation3], %s106
      %s109 = sshll.u32 [#allocation2], 4
      %s110 = int_to_ptr.vmem [resolvable:$true] %s109
      %112 = dma.vmem_to_hbm [thread:$0]  %s110, 128, %s3, [#allocation3]
    $region17: #{tpu_custom_call.1} parent=1 // pred_fallthru
      _
    // Predicated region
    $region18: #{tpu_custom_call.1} parent=1 // pred_check
      _
    $region19: #{tpu_custom_call.1} parent=1 // pred_check_branch
      %114 = sbr.rel (0) target = $region21
    $region20: #{tpu_custom_call.1} parent=1 // pred_region
      %115 = dma.done [#allocation3], 128
    $region21: #{tpu_custom_call.1} parent=1 // pred_fallthru
      _
    %116 = vsyncpa [#allocation3], 1

</llo_original>
